<compile_context>
chip_gen: v6e
topology: v6e:2x2x1
jax: 0.10.0
libtpu: 0.0.40
codegen_flags: <defaults>
</compile_context>

<pallas_src>
import functools

import jax
import jax.numpy as jnp
from jax.experimental import pallas as pl
from jax.experimental.pallas import tpu as pltpu


LN_EPS = 1e-5       # torch.nn.LayerNorm default
LANE = 128
ROW_ALIGN = 16      # bf16 sublane packing -> (16, 128) native tiles
MAX_TILE_B = 2048   # v7x VMEM budget: in/out/weights double-buffered ~1.5 MB at 2048 rows


def _round_up(x, m):
    return (x + m - 1) // m * m


def _cdiv(a, b):
    return -(-a // b)


def _linear_relu_layernorm(h, w_ref, b_ref, g_ref, be_ref, true_n):
    """Linear (bf16 operands, f32 accum) -> ReLU -> LayerNorm over the true_n real lanes.

    Padded weight columns / biases are zero, so padded lanes are exactly 0 after ReLU
    and contribute nothing to the lane reductions; gamma/beta are 0 on padded lanes so
    the padded lanes of the output are 0 as well. Dropout(0.1) is identity (eval mode).
    """
    h = jnp.dot(h.astype(jnp.bfloat16), w_ref[...],
                preferred_element_type=jnp.float32) + b_ref[...]
    h = jnp.maximum(h, 0.0)
    # One-pass statistics (sum / sum-of-squares) -> single reduction chain.
    s = jnp.sum(h, axis=-1, keepdims=True)
    ss = jnp.sum(h * h, axis=-1, keepdims=True)
    inv_n = 1.0 / float(true_n)
    mu = s * inv_n
    var = jnp.maximum(ss * inv_n - mu * mu, 0.0)   # clamp: cancellation can go slightly < 0
    h = (h - mu) * jax.lax.rsqrt(var + LN_EPS)
    return h * g_ref[...] + be_ref[...]


def policy_forward_kernel(hidden_dims,
                          x_ref,
                          w1_ref, b1_ref, g1_ref, be1_ref,
                          w2_ref, b2_ref, g2_ref, be2_ref,
                          w3_ref, b3_ref, g3_ref, be3_ref,
                          wh_ref, bh_ref,
                          logits_ref):
    h = x_ref[...]                                   # bf16 state, cast happens at the dot
    h = _linear_relu_layernorm(h, w1_ref, b1_ref, g1_ref, be1_ref, hidden_dims[0])
    h = _linear_relu_layernorm(h, w2_ref, b2_ref, g2_ref, be2_ref, hidden_dims[1])
    h = _linear_relu_layernorm(h, w3_ref, b3_ref, g3_ref, be3_ref, hidden_dims[2])
    # TODO(synk): nn.Dropout(0.1) is identity in eval mode; training-mode stochastic dropout not implemented.
    logits = jnp.dot(h.astype(jnp.bfloat16), wh_ref[...],
                     preferred_element_type=jnp.float32) + bh_ref[...]
    logits_ref[...] = logits.astype(logits_ref.dtype)   # bf16 writeback (halves HBM store)


def _xavier_uniform(key, fan_in, fan_out, dtype=jnp.float32):
    bound = (6.0 / (fan_in + fan_out)) ** 0.5
    # Stored as (in, out): transposed relative to torch's (out, in), same init distribution.
    return jax.random.uniform(key, (fan_in, fan_out), dtype, minval=-bound, maxval=bound)


def init_policy_params(key, state_dim, action_dims, hidden_dims):
    """True (unpadded) parameters, mirroring the PyTorch module's init."""
    params = {}
    dims = [state_dim] + list(hidden_dims)
    keys = jax.random.split(key, len(hidden_dims) + len(action_dims))
    for i, (din, dout) in enumerate(zip(dims[:-1], dims[1:])):
        params[f"w{i+1}"] = _xavier_uniform(keys[i], din, dout)
        params[f"b{i+1}"] = jnp.full((1, dout), 0.01, jnp.float32)   # nn.init.constant_(bias, 0.01)
        params[f"g{i+1}"] = jnp.ones((1, dout), jnp.float32)         # LayerNorm weight
        params[f"be{i+1}"] = jnp.zeros((1, dout), jnp.float32)       # LayerNorm bias
    # Concatenate all policy heads into one (feat_dim, sum(action_dims)) matmul.
    head_ws, head_bs = [], []
    for j, adim in enumerate(action_dims):
        head_ws.append(_xavier_uniform(keys[len(hidden_dims) + j], dims[-1], adim))
        head_bs.append(jnp.full((1, adim), 0.01, jnp.float32))
    params["wh"] = jnp.concatenate(head_ws, axis=1)
    params["bh"] = jnp.concatenate(head_bs, axis=1)
    return params


def _pad2(a, rows, cols, dtype=None):
    r, c = a.shape
    out = jnp.pad(a, ((0, rows - r), (0, cols - c)))
    return out.astype(dtype) if dtype is not None else out


def pad_policy_params(params, state_dim, action_dims, hidden_dims):
    """Zero-pad every layer width to a multiple of 128 lanes; matmul weights in bf16."""
    padded = {}
    dims_p = [state_dim] + [_round_up(h, LANE) for h in hidden_dims]
    for i in range(len(hidden_dims)):
        din_p, dout_p = dims_p[i], dims_p[i + 1]
        padded[f"w{i+1}"] = _pad2(params[f"w{i+1}"], din_p, dout_p, jnp.bfloat16)
        padded[f"b{i+1}"] = _pad2(params[f"b{i+1}"], 1, dout_p)
        padded[f"g{i+1}"] = _pad2(params[f"g{i+1}"], 1, dout_p)    # gamma = 0 on pad lanes
        padded[f"be{i+1}"] = _pad2(params[f"be{i+1}"], 1, dout_p)  # beta  = 0 on pad lanes
    a_pad = _round_up(sum(action_dims), LANE)
    padded["wh"] = _pad2(params["wh"], dims_p[-1], a_pad, jnp.bfloat16)
    padded["bh"] = _pad2(params["bh"], 1, a_pad)
    return padded


@functools.partial(jax.jit, static_argnames=("action_dims", "hidden_dims"))
def policy_forward(padded_params, state, action_dims, hidden_dims):
    """Returns a list of per-head logits, matching PolicyNetwork.forward (eval mode).

    Callers should feed `state` already in bf16 to avoid an extra HBM copy; any other
    dtype is cast here.
    """
    B, state_dim = state.shape
    a_total = sum(action_dims)
    a_pad = _round_up(a_total, LANE)

    # Batch tiling: big sublane-aligned tiles amortize per-grid-step overhead; whenever
    # the batch allows, use >= 2 grid steps so v7x's two TensorCores both get work.
    # Tile cap (2048) keeps per-tile VMEM ~1.5 MB, safe on v7x's 64 MiB VMEM.
    b_sub = _round_up(B, ROW_ALIGN)
    n_steps = _cdiv(b_sub, MAX_TILE_B)
    if n_steps == 1 and b_sub >= 2 * ROW_ALIGN:
        n_steps = 2
    tile_b = _round_up(_cdiv(b_sub, n_steps), ROW_ALIGN)
    b_pad = tile_b * n_steps

    if state.dtype != jnp.bfloat16:
        state = state.astype(jnp.bfloat16)
    if b_pad != B:
        # Only the ragged tail is padded; power-of-two rollout batches need no pad at all.
        state = jnp.pad(state, ((0, b_pad - B), (0, 0)))

    p = padded_params
    operands = (
        state,
        p["w1"], p["b1"], p["g1"], p["be1"],
        p["w2"], p["b2"], p["g2"], p["be2"],
        p["w3"], p["b3"], p["g3"], p["be3"],
        p["wh"], p["bh"],
    )

    def whole(arr):
        # Weights/biases stay resident in VMEM: same full block at every grid step.
        return pl.BlockSpec(arr.shape, lambda i: (0,) * arr.ndim)

    in_specs = [pl.BlockSpec((tile_b, state_dim), lambda i: (i, 0))]
    in_specs += [whole(a) for a in operands[1:]]
    out_spec = pl.BlockSpec((tile_b, a_pad), lambda i: (i, 0))

    kernel = functools.partial(policy_forward_kernel, tuple(hidden_dims))

    logits_pad = pl.pallas_call(
        kernel,
        out_shape=jax.ShapeDtypeStruct((b_pad, a_pad), jnp.bfloat16),
        grid=(b_pad // tile_b,),
        in_specs=in_specs,
        out_specs=out_spec,
        compiler_params=pltpu.CompilerParams(
            dimension_semantics=("parallel",),   # megacore sharding of batch tiles
            vmem_limit_bytes=32 * 1024 * 1024,
        ),
    )(*operands)

    # Strip padding, upcast, and split concatenated head logits (glue, not hot path).
    logits_cat = logits_pad[:B, :a_total].astype(jnp.float32)
    out, off = [], 0
    for adim in action_dims:
        out.append(logits_cat[:, off:off + adim])
        off += adim
    return out


def _reference_forward(params, state, action_dims):
    """Pure-JAX f32 reference mirroring the PyTorch module (eval mode)."""
    h = state.astype(jnp.float32)
    n_layers = sum(1 for k in params if k.startswith("w") and k != "wh")
    for i in range(1, n_layers + 1):
        h = h @ params[f"w{i}"] + params[f"b{i}"]
        h = jnp.maximum(h, 0.0)
        mu = jnp.mean(h, axis=-1, keepdims=True)
        var = jnp.mean(jnp.square(h - mu), axis=-1, keepdims=True)
        h = (h - mu) / jnp.sqrt(var + LN_EPS)
        h = h * params[f"g{i}"] + params[f"be{i}"]
    logits = h @ params["wh"] + params["bh"]
    out, off = [], 0
    for adim in action_dims:
        out.append(logits[:, off:off + adim])
        off += adim
    return out


if __name__ == "__main__":
    # Small shapes consistent with the module: batch=8, state_dim=32,
    # hidden_dims=[128, 64, 32], multi-discrete action_dims=[4, 6, 3].
    state_dim = 32
    hidden_dims = (128, 64, 32)
    action_dims = (4, 6, 3)
    batch = 8

    key = jax.random.PRNGKey(0)
    pkey, xkey = jax.random.split(key)
    params = init_policy_params(pkey, state_dim, action_dims, hidden_dims)
    padded_params = pad_policy_params(params, state_dim, action_dims, hidden_dims)
    state = jax.random.normal(xkey, (batch, state_dim), jnp.float32)
    state_bf16 = state.astype(jnp.bfloat16)   # observations fed to the kernel in bf16

    logits = policy_forward(padded_params, state_bf16, action_dims, hidden_dims)
    logits = [jax.block_until_ready(l) for l in logits]

    # Compare against the pure-f32 reference on the same (bf16-quantized) observations.
    # Kernel uses bf16 MXU operands / bf16 logits writeback with f32 accumulation and
    # f32 LayerNorm math, so tolerances are loosened accordingly.
    ref = _reference_forward(params, state_bf16.astype(jnp.float32), action_dims)
    for got, want, adim in zip(logits, ref, action_dims):
        assert got.shape == (batch, adim), got.shape
        max_err = float(jnp.max(jnp.abs(got - want)))
        assert jnp.allclose(got, want, atol=1e-1, rtol=1e-1), f"mismatch vs reference, max_err={max_err}"

    print("KERNEL_OK")
</pallas_src>

<mosaic_0001>
module attributes {stable_mosaic.version = 11 : i64} {
  func.func @policy_forward_kernel(%arg0: i32, %arg1: memref<16x32xbf16, #tpu.memory_space<vmem>>, %arg2: memref<32x128xbf16, #tpu.memory_space<vmem>>, %arg3: memref<1x128xf32, #tpu.memory_space<vmem>>, %arg4: memref<1x128xf32, #tpu.memory_space<vmem>>, %arg5: memref<1x128xf32, #tpu.memory_space<vmem>>, %arg6: memref<128x128xbf16, #tpu.memory_space<vmem>>, %arg7: memref<1x128xf32, #tpu.memory_space<vmem>>, %arg8: memref<1x128xf32, #tpu.memory_space<vmem>>, %arg9: memref<1x128xf32, #tpu.memory_space<vmem>>, %arg10: memref<128x128xbf16, #tpu.memory_space<vmem>>, %arg11: memref<1x128xf32, #tpu.memory_space<vmem>>, %arg12: memref<1x128xf32, #tpu.memory_space<vmem>>, %arg13: memref<1x128xf32, #tpu.memory_space<vmem>>, %arg14: memref<128x128xbf16, #tpu.memory_space<vmem>>, %arg15: memref<1x128xf32, #tpu.memory_space<vmem>>, %arg16: memref<16x128xbf16, #tpu.memory_space<vmem>>) attributes {dimension_semantics = [#tpu.dimension_semantics<parallel>], iteration_bounds = array<i64: 1>, scalar_prefetch = 0 : i64, scratch_operands = 0 : i64, tpu.core_type = #tpu.core_type<tc>, window_params = [{transform_indices = @transform_0, window_bounds = array<i64: 16, 32>}, {pipeline_mode = #tpu.pipeline_mode<synchronous>, transform_indices = @transform_1, window_bounds = array<i64: 32, 128>}, {pipeline_mode = #tpu.pipeline_mode<synchronous>, transform_indices = @transform_2, window_bounds = array<i64: 1, 128>}, {pipeline_mode = #tpu.pipeline_mode<synchronous>, transform_indices = @transform_3, window_bounds = array<i64: 1, 128>}, {pipeline_mode = #tpu.pipeline_mode<synchronous>, transform_indices = @transform_4, window_bounds = array<i64: 1, 128>}, {pipeline_mode = #tpu.pipeline_mode<synchronous>, transform_indices = @transform_5, window_bounds = array<i64: 128, 128>}, {pipeline_mode = #tpu.pipeline_mode<synchronous>, transform_indices = @transform_6, window_bounds = array<i64: 1, 128>}, {pipeline_mode = #tpu.pipeline_mode<synchronous>, transform_indices = @transform_7, window_bounds = array<i64: 1, 128>}, {pipeline_mode = #tpu.pipeline_mode<synchronous>, transform_indices = @transform_8, window_bounds = array<i64: 1, 128>}, {pipeline_mode = #tpu.pipeline_mode<synchronous>, transform_indices = @transform_9, window_bounds = array<i64: 128, 128>}, {pipeline_mode = #tpu.pipeline_mode<synchronous>, transform_indices = @transform_10, window_bounds = array<i64: 1, 128>}, {pipeline_mode = #tpu.pipeline_mode<synchronous>, transform_indices = @transform_11, window_bounds = array<i64: 1, 128>}, {pipeline_mode = #tpu.pipeline_mode<synchronous>, transform_indices = @transform_12, window_bounds = array<i64: 1, 128>}, {pipeline_mode = #tpu.pipeline_mode<synchronous>, transform_indices = @transform_13, window_bounds = array<i64: 128, 128>}, {pipeline_mode = #tpu.pipeline_mode<synchronous>, transform_indices = @transform_14, window_bounds = array<i64: 1, 128>}, {transform_indices = @transform_15, window_bounds = array<i64: 16, 128>}]} {
    %c0 = arith.constant 0 : index
    %c0_0 = arith.constant 0 : index
    %0 = vector.load %arg1[%c0, %c0_0] : memref<16x32xbf16, #tpu.memory_space<vmem>>, vector<16x32xbf16>
    %c0_1 = arith.constant 0 : index
    %c0_2 = arith.constant 0 : index
    %1 = vector.load %arg2[%c0_1, %c0_2] : memref<32x128xbf16, #tpu.memory_space<vmem>>, vector<32x128xbf16>
    %cst = arith.constant dense<0.000000e+00> : vector<16x128xf32>
    %2 = tpu.matmul %0, %1, %cst {dimension_numbers = #tpu.dot_dimension_numbers<[1], [0], [0], [1], [0, 0, 1, 1], [], []>} : vector<16x32xbf16>, vector<32x128xbf16>, vector<16x128xf32> -> vector<16x128xf32>
    %c0_3 = arith.constant 0 : index
    %c0_4 = arith.constant 0 : index
    %3 = vector.load %arg3[%c0_3, %c0_4] : memref<1x128xf32, #tpu.memory_space<vmem>>, vector<1x128xf32>
    %4 = vector.broadcast %3 : vector<1x128xf32> to vector<16x128xf32>
    %5 = arith.addf %2, %4 : vector<16x128xf32>
    %cst_5 = arith.constant 0.000000e+00 : f32
    %6 = vector.broadcast %cst_5 : f32 to vector<16x128xf32>
    %7 = arith.maximumf %5, %6 : vector<16x128xf32>
    %cst_6 = arith.constant dense<0.000000e+00> : vector<16xf32>
    %8 = vector.multi_reduction <add>, %7, %cst_6 [1] : vector<16x128xf32> to vector<16xf32>
    %9 = vector.shape_cast %8 : vector<16xf32> to vector<16x1xf32>
    %10 = arith.mulf %7, %7 : vector<16x128xf32>
    %cst_7 = arith.constant dense<0.000000e+00> : vector<16xf32>
    %11 = vector.multi_reduction <add>, %10, %cst_7 [1] : vector<16x128xf32> to vector<16xf32>
    %12 = vector.shape_cast %11 : vector<16xf32> to vector<16x1xf32>
    %cst_8 = arith.constant 7.812500e-03 : f32
    %13 = vector.broadcast %cst_8 : f32 to vector<16x1xf32>
    %14 = arith.mulf %9, %13 : vector<16x1xf32>
    %cst_9 = arith.constant 7.812500e-03 : f32
    %15 = vector.broadcast %cst_9 : f32 to vector<16x1xf32>
    %16 = arith.mulf %12, %15 : vector<16x1xf32>
    %17 = arith.mulf %14, %14 : vector<16x1xf32>
    %18 = arith.subf %16, %17 : vector<16x1xf32>
    %cst_10 = arith.constant 0.000000e+00 : f32
    %19 = vector.broadcast %cst_10 : f32 to vector<16x1xf32>
    %20 = arith.maximumf %18, %19 : vector<16x1xf32>
    %21 = vector.broadcast %14 : vector<16x1xf32> to vector<16x128xf32>
    %22 = arith.subf %7, %21 : vector<16x128xf32>
    %cst_11 = arith.constant 9.99999974E-6 : f32
    %23 = vector.broadcast %cst_11 : f32 to vector<16x1xf32>
    %24 = arith.addf %20, %23 : vector<16x1xf32>
    %25 = math.rsqrt %24 : vector<16x1xf32>
    %26 = vector.broadcast %25 : vector<16x1xf32> to vector<16x128xf32>
    %27 = arith.mulf %22, %26 : vector<16x128xf32>
    %c0_12 = arith.constant 0 : index
    %c0_13 = arith.constant 0 : index
    %28 = vector.load %arg4[%c0_12, %c0_13] : memref<1x128xf32, #tpu.memory_space<vmem>>, vector<1x128xf32>
    %29 = vector.broadcast %28 : vector<1x128xf32> to vector<16x128xf32>
    %30 = arith.mulf %27, %29 : vector<16x128xf32>
    %c0_14 = arith.constant 0 : index
    %c0_15 = arith.constant 0 : index
    %31 = vector.load %arg5[%c0_14, %c0_15] : memref<1x128xf32, #tpu.memory_space<vmem>>, vector<1x128xf32>
    %32 = vector.broadcast %31 : vector<1x128xf32> to vector<16x128xf32>
    %33 = arith.addf %30, %32 : vector<16x128xf32>
    %34 = arith.truncf %33 : vector<16x128xf32> to vector<16x128xbf16>
    %c0_16 = arith.constant 0 : index
    %c0_17 = arith.constant 0 : index
    %35 = vector.load %arg6[%c0_16, %c0_17] : memref<128x128xbf16, #tpu.memory_space<vmem>>, vector<128x128xbf16>
    %cst_18 = arith.constant dense<0.000000e+00> : vector<16x128xf32>
    %36 = tpu.matmul %34, %35, %cst_18 {dimension_numbers = #tpu.dot_dimension_numbers<[1], [0], [0], [1], [0, 0, 1, 1], [], []>} : vector<16x128xbf16>, vector<128x128xbf16>, vector<16x128xf32> -> vector<16x128xf32>
    %c0_19 = arith.constant 0 : index
    %c0_20 = arith.constant 0 : index
    %37 = vector.load %arg7[%c0_19, %c0_20] : memref<1x128xf32, #tpu.memory_space<vmem>>, vector<1x128xf32>
    %38 = vector.broadcast %37 : vector<1x128xf32> to vector<16x128xf32>
    %39 = arith.addf %36, %38 : vector<16x128xf32>
    %cst_21 = arith.constant 0.000000e+00 : f32
    %40 = vector.broadcast %cst_21 : f32 to vector<16x128xf32>
    %41 = arith.maximumf %39, %40 : vector<16x128xf32>
    %cst_22 = arith.constant dense<0.000000e+00> : vector<16xf32>
    %42 = vector.multi_reduction <add>, %41, %cst_22 [1] : vector<16x128xf32> to vector<16xf32>
    %43 = vector.shape_cast %42 : vector<16xf32> to vector<16x1xf32>
    %44 = arith.mulf %41, %41 : vector<16x128xf32>
    %cst_23 = arith.constant dense<0.000000e+00> : vector<16xf32>
    %45 = vector.multi_reduction <add>, %44, %cst_23 [1] : vector<16x128xf32> to vector<16xf32>
    %46 = vector.shape_cast %45 : vector<16xf32> to vector<16x1xf32>
    %cst_24 = arith.constant 1.562500e-02 : f32
    %47 = vector.broadcast %cst_24 : f32 to vector<16x1xf32>
    %48 = arith.mulf %43, %47 : vector<16x1xf32>
    %cst_25 = arith.constant 1.562500e-02 : f32
    %49 = vector.broadcast %cst_25 : f32 to vector<16x1xf32>
    %50 = arith.mulf %46, %49 : vector<16x1xf32>
    %51 = arith.mulf %48, %48 : vector<16x1xf32>
    %52 = arith.subf %50, %51 : vector<16x1xf32>
    %cst_26 = arith.constant 0.000000e+00 : f32
    %53 = vector.broadcast %cst_26 : f32 to vector<16x1xf32>
    %54 = arith.maximumf %52, %53 : vector<16x1xf32>
    %55 = vector.broadcast %48 : vector<16x1xf32> to vector<16x128xf32>
    %56 = arith.subf %41, %55 : vector<16x128xf32>
    %cst_27 = arith.constant 9.99999974E-6 : f32
    %57 = vector.broadcast %cst_27 : f32 to vector<16x1xf32>
    %58 = arith.addf %54, %57 : vector<16x1xf32>
    %59 = math.rsqrt %58 : vector<16x1xf32>
    %60 = vector.broadcast %59 : vector<16x1xf32> to vector<16x128xf32>
    %61 = arith.mulf %56, %60 : vector<16x128xf32>
    %c0_28 = arith.constant 0 : index
    %c0_29 = arith.constant 0 : index
    %62 = vector.load %arg8[%c0_28, %c0_29] : memref<1x128xf32, #tpu.memory_space<vmem>>, vector<1x128xf32>
    %63 = vector.broadcast %62 : vector<1x128xf32> to vector<16x128xf32>
    %64 = arith.mulf %61, %63 : vector<16x128xf32>
    %c0_30 = arith.constant 0 : index
    %c0_31 = arith.constant 0 : index
    %65 = vector.load %arg9[%c0_30, %c0_31] : memref<1x128xf32, #tpu.memory_space<vmem>>, vector<1x128xf32>
    %66 = vector.broadcast %65 : vector<1x128xf32> to vector<16x128xf32>
    %67 = arith.addf %64, %66 : vector<16x128xf32>
    %68 = arith.truncf %67 : vector<16x128xf32> to vector<16x128xbf16>
    %c0_32 = arith.constant 0 : index
    %c0_33 = arith.constant 0 : index
    %69 = vector.load %arg10[%c0_32, %c0_33] : memref<128x128xbf16, #tpu.memory_space<vmem>>, vector<128x128xbf16>
    %cst_34 = arith.constant dense<0.000000e+00> : vector<16x128xf32>
    %70 = tpu.matmul %68, %69, %cst_34 {dimension_numbers = #tpu.dot_dimension_numbers<[1], [0], [0], [1], [0, 0, 1, 1], [], []>} : vector<16x128xbf16>, vector<128x128xbf16>, vector<16x128xf32> -> vector<16x128xf32>
    %c0_35 = arith.constant 0 : index
    %c0_36 = arith.constant 0 : index
    %71 = vector.load %arg11[%c0_35, %c0_36] : memref<1x128xf32, #tpu.memory_space<vmem>>, vector<1x128xf32>
    %72 = vector.broadcast %71 : vector<1x128xf32> to vector<16x128xf32>
    %73 = arith.addf %70, %72 : vector<16x128xf32>
    %cst_37 = arith.constant 0.000000e+00 : f32
    %74 = vector.broadcast %cst_37 : f32 to vector<16x128xf32>
    %75 = arith.maximumf %73, %74 : vector<16x128xf32>
    %cst_38 = arith.constant dense<0.000000e+00> : vector<16xf32>
    %76 = vector.multi_reduction <add>, %75, %cst_38 [1] : vector<16x128xf32> to vector<16xf32>
    %77 = vector.shape_cast %76 : vector<16xf32> to vector<16x1xf32>
    %78 = arith.mulf %75, %75 : vector<16x128xf32>
    %cst_39 = arith.constant dense<0.000000e+00> : vector<16xf32>
    %79 = vector.multi_reduction <add>, %78, %cst_39 [1] : vector<16x128xf32> to vector<16xf32>
    %80 = vector.shape_cast %79 : vector<16xf32> to vector<16x1xf32>
    %cst_40 = arith.constant 3.125000e-02 : f32
    %81 = vector.broadcast %cst_40 : f32 to vector<16x1xf32>
    %82 = arith.mulf %77, %81 : vector<16x1xf32>
    %cst_41 = arith.constant 3.125000e-02 : f32
    %83 = vector.broadcast %cst_41 : f32 to vector<16x1xf32>
    %84 = arith.mulf %80, %83 : vector<16x1xf32>
    %85 = arith.mulf %82, %82 : vector<16x1xf32>
    %86 = arith.subf %84, %85 : vector<16x1xf32>
    %cst_42 = arith.constant 0.000000e+00 : f32
    %87 = vector.broadcast %cst_42 : f32 to vector<16x1xf32>
    %88 = arith.maximumf %86, %87 : vector<16x1xf32>
    %89 = vector.broadcast %82 : vector<16x1xf32> to vector<16x128xf32>
    %90 = arith.subf %75, %89 : vector<16x128xf32>
    %cst_43 = arith.constant 9.99999974E-6 : f32
    %91 = vector.broadcast %cst_43 : f32 to vector<16x1xf32>
    %92 = arith.addf %88, %91 : vector<16x1xf32>
    %93 = math.rsqrt %92 : vector<16x1xf32>
    %94 = vector.broadcast %93 : vector<16x1xf32> to vector<16x128xf32>
    %95 = arith.mulf %90, %94 : vector<16x128xf32>
    %c0_44 = arith.constant 0 : index
    %c0_45 = arith.constant 0 : index
    %96 = vector.load %arg12[%c0_44, %c0_45] : memref<1x128xf32, #tpu.memory_space<vmem>>, vector<1x128xf32>
    %97 = vector.broadcast %96 : vector<1x128xf32> to vector<16x128xf32>
    %98 = arith.mulf %95, %97 : vector<16x128xf32>
    %c0_46 = arith.constant 0 : index
    %c0_47 = arith.constant 0 : index
    %99 = vector.load %arg13[%c0_46, %c0_47] : memref<1x128xf32, #tpu.memory_space<vmem>>, vector<1x128xf32>
    %100 = vector.broadcast %99 : vector<1x128xf32> to vector<16x128xf32>
    %101 = arith.addf %98, %100 : vector<16x128xf32>
    %102 = arith.truncf %101 : vector<16x128xf32> to vector<16x128xbf16>
    %c0_48 = arith.constant 0 : index
    %c0_49 = arith.constant 0 : index
    %103 = vector.load %arg14[%c0_48, %c0_49] : memref<128x128xbf16, #tpu.memory_space<vmem>>, vector<128x128xbf16>
    %cst_50 = arith.constant dense<0.000000e+00> : vector<16x128xf32>
    %104 = tpu.matmul %102, %103, %cst_50 {dimension_numbers = #tpu.dot_dimension_numbers<[1], [0], [0], [1], [0, 0, 1, 1], [], []>} : vector<16x128xbf16>, vector<128x128xbf16>, vector<16x128xf32> -> vector<16x128xf32>
    %c0_51 = arith.constant 0 : index
    %c0_52 = arith.constant 0 : index
    %105 = vector.load %arg15[%c0_51, %c0_52] : memref<1x128xf32, #tpu.memory_space<vmem>>, vector<1x128xf32>
    %106 = vector.broadcast %105 : vector<1x128xf32> to vector<16x128xf32>
    %107 = arith.addf %104, %106 : vector<16x128xf32>
    %108 = arith.truncf %107 : vector<16x128xf32> to vector<16x128xbf16>
    %c0_53 = arith.constant 0 : index
    %c0_54 = arith.constant 0 : index
    %109 = vector.load %arg16[%c0_53, %c0_54] : memref<16x128xbf16, #tpu.memory_space<vmem>>, vector<16x128xbf16>
    tpu.vector_store %arg16[%c0_53, %c0_54], %108 {strides = array<i32>} : memref<16x128xbf16, #tpu.memory_space<vmem>>, vector<16x128xbf16>,
    return
  }
  func.func @transform_0(%arg0: i32) -> (i32, i32) {
    %c0_i32 = arith.constant 0 : i32
    %c0_i32_0 = arith.constant 0 : i32
    return %arg0, %c0_i32 : i32, i32
  }
  func.func @transform_1(%arg0: i32) -> (i32, i32) {
    %c0_i32 = arith.constant 0 : i32
    %c0_i32_0 = arith.constant 0 : i32
    %c0_i32_1 = arith.constant 0 : i32
    return %c0_i32, %c0_i32_0 : i32, i32
  }
  func.func @transform_2(%arg0: i32) -> (i32, i32) {
    %c0_i32 = arith.constant 0 : i32
    %c0_i32_0 = arith.constant 0 : i32
    %c0_i32_1 = arith.constant 0 : i32
    return %c0_i32, %c0_i32_0 : i32, i32
  }
  func.func @transform_3(%arg0: i32) -> (i32, i32) {
    %c0_i32 = arith.constant 0 : i32
    %c0_i32_0 = arith.constant 0 : i32
    %c0_i32_1 = arith.constant 0 : i32
    return %c0_i32, %c0_i32_0 : i32, i32
  }
  func.func @transform_4(%arg0: i32) -> (i32, i32) {
    %c0_i32 = arith.constant 0 : i32
    %c0_i32_0 = arith.constant 0 : i32
    %c0_i32_1 = arith.constant 0 : i32
    return %c0_i32, %c0_i32_0 : i32, i32
  }
  func.func @transform_5(%arg0: i32) -> (i32, i32) {
    %c0_i32 = arith.constant 0 : i32
    %c0_i32_0 = arith.constant 0 : i32
    %c0_i32_1 = arith.constant 0 : i32
    return %c0_i32, %c0_i32_0 : i32, i32
  }
  func.func @transform_6(%arg0: i32) -> (i32, i32) {
    %c0_i32 = arith.constant 0 : i32
    %c0_i32_0 = arith.constant 0 : i32
    %c0_i32_1 = arith.constant 0 : i32
    return %c0_i32, %c0_i32_0 : i32, i32
  }
  func.func @transform_7(%arg0: i32) -> (i32, i32) {
    %c0_i32 = arith.constant 0 : i32
    %c0_i32_0 = arith.constant 0 : i32
    %c0_i32_1 = arith.constant 0 : i32
    return %c0_i32, %c0_i32_0 : i32, i32
  }
  func.func @transform_8(%arg0: i32) -> (i32, i32) {
    %c0_i32 = arith.constant 0 : i32
    %c0_i32_0 = arith.constant 0 : i32
    %c0_i32_1 = arith.constant 0 : i32
    return %c0_i32, %c0_i32_0 : i32, i32
  }
  func.func @transform_9(%arg0: i32) -> (i32, i32) {
    %c0_i32 = arith.constant 0 : i32
    %c0_i32_0 = arith.constant 0 : i32
    %c0_i32_1 = arith.constant 0 : i32
    return %c0_i32, %c0_i32_0 : i32, i32
  }
  func.func @transform_10(%arg0: i32) -> (i32, i32) {
    %c0_i32 = arith.constant 0 : i32
    %c0_i32_0 = arith.constant 0 : i32
    %c0_i32_1 = arith.constant 0 : i32
    return %c0_i32, %c0_i32_0 : i32, i32
  }
  func.func @transform_11(%arg0: i32) -> (i32, i32) {
    %c0_i32 = arith.constant 0 : i32
    %c0_i32_0 = arith.constant 0 : i32
    %c0_i32_1 = arith.constant 0 : i32
    return %c0_i32, %c0_i32_0 : i32, i32
  }
  func.func @transform_12(%arg0: i32) -> (i32, i32) {
    %c0_i32 = arith.constant 0 : i32
    %c0_i32_0 = arith.constant 0 : i32
    %c0_i32_1 = arith.constant 0 : i32
    return %c0_i32, %c0_i32_0 : i32, i32
  }
  func.func @transform_13(%arg0: i32) -> (i32, i32) {
    %c0_i32 = arith.constant 0 : i32
    %c0_i32_0 = arith.constant 0 : i32
    %c0_i32_1 = arith.constant 0 : i32
    return %c0_i32, %c0_i32_0 : i32, i32
  }
  func.func @transform_14(%arg0: i32) -> (i32, i32) {
    %c0_i32 = arith.constant 0 : i32
    %c0_i32_0 = arith.constant 0 : i32
    %c0_i32_1 = arith.constant 0 : i32
    return %c0_i32, %c0_i32_0 : i32, i32
  }
  func.func @transform_15(%arg0: i32) -> (i32, i32) {
    %c0_i32 = arith.constant 0 : i32
    %c0_i32_0 = arith.constant 0 : i32
    return %arg0, %c0_i32 : i32, i32
  }
}

</mosaic_0001>

<llo_original>
// kernel: policy_forward.1
$region0: #{policy_forward.1}
  #allocation0 [shape = 'u32[]', space=smem, size = 0x4, offset = 0x4, fixed_abs, tag = 'smem constant byte address 0x4 - core index']
  #allocation1 [shape = 'u32[144,128]{1,0:T(1,128)}', space=vmem, size = 0x12000, scoped, tag = 'internal scratch']
  %s0 = inlined_call_operand.vmem [shape: bf16[16,32], index: 0, kind: input, shape index: {}]
  %s1 = inlined_call_operand.vmem [shape: bf16[32,128], index: 1, kind: input, shape index: {}]
  %s2 = inlined_call_operand.vmem [shape: f32[1,128], index: 2, kind: input, shape index: {}]
  %s3 = inlined_call_operand.vmem [shape: f32[1,128], index: 3, kind: input, shape index: {}]
  %s4 = inlined_call_operand.vmem [shape: f32[1,128], index: 4, kind: input, shape index: {}]
  %s5 = inlined_call_operand.hbm [shape: bf16[128,128], index: 5, kind: input, shape index: {}]
  %s6 = inlined_call_operand.vmem [shape: f32[1,128], index: 6, kind: input, shape index: {}]
  %s7 = inlined_call_operand.vmem [shape: f32[1,128], index: 7, kind: input, shape index: {}]
  %s8 = inlined_call_operand.vmem [shape: f32[1,128], index: 8, kind: input, shape index: {}]
  %s9 = inlined_call_operand.hbm [shape: bf16[128,128], index: 9, kind: input, shape index: {}]
  %s10 = inlined_call_operand.vmem [shape: f32[1,128], index: 10, kind: input, shape index: {}]
  %s11 = inlined_call_operand.vmem [shape: f32[1,128], index: 11, kind: input, shape index: {}]
  %s12 = inlined_call_operand.vmem [shape: f32[1,128], index: 12, kind: input, shape index: {}]
  %s13 = inlined_call_operand.hbm [shape: bf16[128,128], index: 13, kind: input, shape index: {}]
  %s14 = inlined_call_operand.vmem [shape: f32[1,128], index: 14, kind: input, shape index: {}]
  %s15 = inlined_call_operand.vmem [shape: bf16[16,128], index: 15, kind: output, shape index: {}]
  %s16 = sld [smem:[#allocation0]]
  $region82: #{policy_forward.1} parent=0
    _
  %s18 = ssub.s32 1, %s16
  %s19 = scalar_select 0, %s18, %s16
  $region1: #{policy_forward.1} parent=0
    #allocation2 [shape = 'u8[32768]{0}', space=vmem, size = 0x8000, scoped, tag = 'input window, operand 5, single buffered']
    #allocation3 [shape = 's32[1]{0}', space=sflag, size = 0x4, scoped, tag = 'scoped memory for policy_forward.1']
    #allocation4 [shape = 'u8[32768]{0}', space=vmem, size = 0x8000, scoped, tag = 'input window, operand 9, single buffered']
    #allocation5 [shape = 's32[1]{0}', space=sflag, size = 0x4, scoped, tag = 'scoped memory for policy_forward.1']
    #allocation6 [shape = 'u8[32768]{0}', space=vmem, size = 0x8000, scoped, tag = 'input window, operand 13, single buffered']
    %20 = vsyncpa [#allocation3], 0
    %21 = vsyncpa [#allocation5], 0
    // Predicated region
    $region2: #{policy_forward.1} parent=1 // pred_check
      _
    $region3: #{policy_forward.1} parent=1 // pred_check_branch
      %23 = sbr.rel (0) target = $region5
    $region4: #{policy_forward.1} parent=1 // pred_region
      _
    $region5: #{policy_forward.1} parent=1 // pred_fallthru
      _
    // Predicated region
    $region6: #{policy_forward.1} parent=1 // pred_check
      _
    $region7: #{policy_forward.1} parent=1 // pred_check_branch
      %25 = sbr.rel (0) target = $region9
    $region8: #{policy_forward.1} parent=1 // pred_region
      _
    $region9: #{policy_forward.1} parent=1 // pred_fallthru
      _
    // Predicated region
    $region10: #{policy_forward.1} parent=1 // pred_check
      _
    $region11: #{policy_forward.1} parent=1 // pred_check_branch
      %27 = sbr.rel (0) target = $region13
    $region12: #{policy_forward.1} parent=1 // pred_region
      _
    $region13: #{policy_forward.1} parent=1 // pred_fallthru
      _
    // Predicated region
    $region14: #{policy_forward.1} parent=1 // pred_check
      _
    $region15: #{policy_forward.1} parent=1 // pred_check_branch
      %29 = sbr.rel (0) target = $region17
    $region16: #{policy_forward.1} parent=1 // pred_region
      _
    $region17: #{policy_forward.1} parent=1 // pred_fallthru
      _
    // Predicated region
    $region18: #{policy_forward.1} parent=1 // pred_check
      _
    $region19: #{policy_forward.1} parent=1 // pred_check_branch
      %31 = sbr.rel (0) target = $region21
    $region20: #{policy_forward.1} parent=1 // pred_region
      _
    $region21: #{policy_forward.1} parent=1 // pred_fallthru
      _
    // Predicated region
    $region22: #{policy_forward.1} parent=1 // pred_check
      _
    $region23: #{policy_forward.1} parent=1 // pred_check_branch
      %33 = sbr.rel (0) target = $region25
    $region24: #{policy_forward.1} parent=1 // pred_region
      %s35 = ssub.s32 1024, 1024
      %36 = vsyncadd [#allocation3], %s35
      %s37 = sshll.u32 [#allocation2], 4
      %s38 = int_to_ptr.vmem [resolvable:$true] %s37
      %43 = dma.hbm_to_vmem [thread:$0]  %s5, 1024, %s38, [#allocation3], 64, 64, 4
    $region25: #{policy_forward.1} parent=1 // pred_fallthru
      _
    // Predicated region
    $region26: #{policy_forward.1} parent=1 // pred_check
      _
    $region27: #{policy_forward.1} parent=1 // pred_check_branch
      %45 = sbr.rel (0) target = $region29
    $region28: #{policy_forward.1} parent=1 // pred_region
      _
    $region29: #{policy_forward.1} parent=1 // pred_fallthru
      _
    // Predicated region
    $region30: #{policy_forward.1} parent=1 // pred_check
      _
    $region31: #{policy_forward.1} parent=1 // pred_check_branch
      %47 = sbr.rel (0) target = $region33
    $region32: #{policy_forward.1} parent=1 // pred_region
      _
    $region33: #{policy_forward.1} parent=1 // pred_fallthru
      _
    // Predicated region
    $region34: #{policy_forward.1} parent=1 // pred_check
      _
    $region35: #{policy_forward.1} parent=1 // pred_check_branch
      %49 = sbr.rel (0) target = $region37
    $region36: #{policy_forward.1} parent=1 // pred_region
      _
    $region37: #{policy_forward.1} parent=1 // pred_fallthru
      _
    // Predicated region
    $region38: #{policy_forward.1} parent=1 // pred_check
      _
    $region39: #{policy_forward.1} parent=1 // pred_check_branch
      %51 = sbr.rel (0) target = $region41
    $region40: #{policy_forward.1} parent=1 // pred_region
      %s53 = ssub.s32 1024, 1024
      %54 = vsyncadd [#allocation5], %s53
      %s55 = sshll.u32 [#allocation4], 4
      %s56 = int_to_ptr.vmem [resolvable:$true] %s55
      %61 = dma.hbm_to_vmem [thread:$0]  %s9, 1024, %s56, [#allocation5], 64, 64, 4
    $region41: #{policy_forward.1} parent=1 // pred_fallthru
      _
    // Predicated region
    $region42: #{policy_forward.1} parent=1 // pred_check
      _
    $region43: #{policy_forward.1} parent=1 // pred_check_branch
      %63 = sbr.rel (0) target = $region45
    $region44: #{policy_forward.1} parent=1 // pred_region
      _
    $region45: #{policy_forward.1} parent=1 // pred_fallthru
      _
    // Predicated region
    $region46: #{policy_forward.1} parent=1 // pred_check
      _
    $region47: #{policy_forward.1} parent=1 // pred_check_branch
      %65 = sbr.rel (0) target = $region49
    $region48: #{policy_forward.1} parent=1 // pred_region
      _
    $region49: #{policy_forward.1} parent=1 // pred_fallthru
      _
    // Predicated region
    $region50: #{policy_forward.1} parent=1 // pred_check
      _
    $region51: #{policy_forward.1} parent=1 // pred_check_branch
      %67 = sbr.rel (0) target = $region53
    $region52: #{policy_forward.1} parent=1 // pred_region
      _
    $region53: #{policy_forward.1} parent=1 // pred_fallthru
      _
    // Predicated region
    $region54: #{policy_forward.1} parent=1 // pred_check
      _
    $region55: #{policy_forward.1} parent=1 // pred_check_branch
      %69 = sbr.rel (0) target = $region57
    $region56: #{policy_forward.1} parent=1 // pred_region
      %s71 = ssub.s32 1024, 1024
      %72 = vsyncadd [#allocation5], %s71
      %s73 = sshll.u32 [#allocation6], 4
      %s74 = int_to_ptr.vmem [resolvable:$true] %s73
      %79 = dma.hbm_to_vmem [thread:$0]  %s13, 1024, %s74, [#allocation5], 64, 64, 4
    $region57: #{policy_forward.1} parent=1 // pred_fallthru
      _
    // Predicated region
    $region58: #{policy_forward.1} parent=1 // pred_check
      _
    $region59: #{policy_forward.1} parent=1 // pred_check_branch
      %81 = sbr.rel (0) target = $region61
    $region60: #{policy_forward.1} parent=1 // pred_region
      _
    $region61: #{policy_forward.1} parent=1 // pred_fallthru
      _
    // Predicated region
    $region62: #{policy_forward.1} parent=1 // pred_check
      _
    $region63: #{policy_forward.1} parent=1 // pred_check_branch
      %83 = sbr.rel (0) target = $region65
    $region64: #{policy_forward.1} parent=1 // pred_region
      %84 = dma.done [#allocation3], 1024
    $region65: #{policy_forward.1} parent=1 // pred_fallthru
      _
    // Predicated region
    $region66: #{policy_forward.1} parent=1 // pred_check
      _
    $region67: #{policy_forward.1} parent=1 // pred_check_branch
      %86 = sbr.rel (0) target = $region69
    $region68: #{policy_forward.1} parent=1 // pred_region
      %87 = dma.done [#allocation5], 1024
    $region69: #{policy_forward.1} parent=1 // pred_fallthru
      _
    // Predicated region
    $region70: #{policy_forward.1} parent=1 // pred_check
      _
    $region71: #{policy_forward.1} parent=1 // pred_check_branch
      %89 = sbr.rel (0) target = $region73
    $region72: #{policy_forward.1} parent=1 // pred_region
      %90 = dma.done [#allocation5], 1024
    $region73: #{policy_forward.1} parent=1 // pred_fallthru
      _
    %v92 = vld [vmem:[%s0] sm:$0xf]
    %v93 = vld [vmem:[%s0 + $0x4] sm:$0xf]
    %v94 = vld [vmem:[%s1] sm:$0xf]
    %v95 = vld [vmem:[%s1 + $0x4] sm:$0xf]
    %v96 = vld [vmem:[%s1 + $0x8] sm:$0xf]
    %v97 = vld [vmem:[%s1 + $0xc] sm:$0xf]
    %v98 = vld [vmem:[%s2] sm:$0x1]
    %v100 = vlaneseq
    %v101 = vshrl.u32 %v100, 7
    %v102 = vsub.s32 0, %v101
    %v103 = vrot.slane %v98, %v102
    %v107 = vunpack.c.l.b16 %v92
    %v108 = vunpack.c.l.b16 %v93
    %v109 = vpack.c.b16 %v108, %v107
    %v114 = vunpack.c.l.b16 %v94
    %v115 = vunpack.c.l.b16 %v95
    %v116 = vunpack.c.l.b16 %v96
    %v117 = vunpack.c.l.b16 %v97
    %v118 = vpack.c.b16 %v115, %v114
    %v119 = vpack.c.b16 %v117, %v116
    %vm122 = vcmask 261120
    %v124 = vsel %vm122, %v109, 0
    %126 = vmatprep.subr.bf16.mxu0 0
    %127 = vmatpush1.bf16.msra.mxu0 0
    %128 = vmatprep.subr.bf16.mxu0 0
    %129 = vmatpush1.bf16.msra.mxu0 0
    %130 = vmatprep.subr.bf16.mxu0 0
    %131 = vmatpush1.bf16.msra.mxu0 0
    %132 = vmatprep.subr.bf16.mxu0 0
    %133 = vmatpush1.bf16.msra.mxu0 0
    %134 = vmatprep.subr.bf16.mxu0 0
    %135 = vmatpush1.bf16.msra.mxu0 0
    %136 = vmatprep.subr.bf16.mxu0 0
    %137 = vmatpush1.bf16.msra.mxu0 0
    %138 = vmatprep.subr.bf16.mxu0 0
    %139 = vmatpush1.bf16.msra.mxu0 %v119
    %140 = vmatprep.subr.bf16.mxu0 0
    %141 = vmatpush1.bf16.msra.mxu0 %v118
    %142 = vmatprep.subr.bf16.mxu0 0
    %143 = vmatpush2.bf16.msra.mxu0 0
    %144 = vmatprep.subr.bf16.mxu0 0
    %145 = vmatpush2.bf16.msra.mxu0 0
    %146 = vmatprep.subr.bf16.mxu0 0
    %147 = vmatpush2.bf16.msra.mxu0 0
    %148 = vmatprep.subr.bf16.mxu0 0
    %149 = vmatpush2.bf16.msra.mxu0 0
    %150 = vmatprep.subr.bf16.mxu0 0
    %151 = vmatpush2.bf16.msra.mxu0 0
    %152 = vmatprep.subr.bf16.mxu0 0
    %153 = vmatpush2.bf16.msra.mxu0 0
    %154 = vmatprep.subr.bf16.mxu0 0
    %155 = vmatpush2.bf16.msra.mxu0 0
    %156 = vmatprep.subr.bf16.mxu0 0
    %157 = vmatpush2.bf16.msra.mxu0 0
    %158 = vmatprep.mubr.bf16.mxu0 0
    %159 = vmatmul.mubr.bf16.gmra.mxu0 %v124
    %v160 = vpop.f32.mrf.mxu0
    %v161 = vadd.f32 %v103, %v160
    %v162 = vpop.f32.mrf.mxu0
    %v163 = vpop.f32.mrf.mxu0
    %v164 = vadd.f32 %v103, %v163
    %v165 = vpop.f32.mrf.mxu0
    %166 = vdwg.mxu0
    %v167 = vmax.f32 %v161, 0.0
    %v168 = vmax.f32 %v164, 0.0
    %169 = vadd.xlane.f32.xlu0 %v167
    %v170 = vpop.xlane.xlu0 %169
    %171 = vadd.xlane.f32.xlu0 %v168
    %v172 = vpop.xlane.xlu0 %171
    %v173 = vmul.f32 %v167, %v167
    %v174 = vmul.f32 %v168, %v168
    %175 = vadd.xlane.f32.xlu0 %v173
    %v176 = vpop.xlane.xlu0 %175
    %177 = vadd.xlane.f32.xlu0 %v174
    %v178 = vpop.xlane.xlu0 %177
    %v179 = vmul.f32 %v170, 0.0078125
    %v180 = vmul.f32 %v172, 0.0078125
    %v181 = vmul.f32 %v176, 0.0078125
    %v182 = vmul.f32 %v178, 0.0078125
    %v183 = vmul.f32 %v179, %v179
    %v184 = vmul.f32 %v180, %v180
    %v185 = vsub.f32 %v181, %v183
    %v186 = vsub.f32 %v182, %v184
    %v187 = vmax.f32 %v185, 0.0
    %v188 = vmax.f32 %v186, 0.0
    %v189 = vsub.f32 %v167, %v179
    %v190 = vsub.f32 %v168, %v180
    %v191 = vadd.f32 %v187, 1e-05
    %v192 = vadd.f32 %v188, 1e-05
    %v193 = vrsqrt.pop %v191
    %v194 = vrsqrt.pop %v192
    %v195 = vmul.f32 %v189, %v193
    %v196 = vmul.f32 %v190, %v194
    %v197 = vld [vmem:[%s3] sm:$0x1]
    %v199 = vlaneseq
    %v200 = vshrl.u32 %v199, 7
    %v201 = vsub.s32 0, %v200
    %v202 = vrot.slane %v197, %v201
    %v204 = vmul.f32 %v195, %v202
    %v205 = vmul.f32 %v196, %v202
    %v206 = vld [vmem:[%s4] sm:$0x1]
    %v208 = vlaneseq
    %v209 = vshrl.u32 %v208, 7
    %v210 = vsub.s32 0, %v209
    %v211 = vrot.slane %v206, %v210
    %v213 = vadd.f32 %v204, %v211
    %v214 = vadd.f32 %v205, %v211
    %v215 = vpack.c.bf16 %v214, %v213
    %v216 = vld [vmem:[#allocation2] sm:$0xf]
    %v217 = vld [vmem:[#allocation2 + $0x4] sm:$0xf]
    %v218 = vld [vmem:[#allocation2 + $0x8] sm:$0xf]
    %v219 = vld [vmem:[#allocation2 + $0xc] sm:$0xf]
    %v220 = vld [vmem:[#allocation2 + $0x10] sm:$0xf]
    %v221 = vld [vmem:[#allocation2 + $0x14] sm:$0xf]
    %v222 = vld [vmem:[#allocation2 + $0x18] sm:$0xf]
    %v223 = vld [vmem:[#allocation2 + $0x1c] sm:$0xf]
    %v224 = vld [vmem:[#allocation2 + $0x20] sm:$0xf]
    %v225 = vld [vmem:[#allocation2 + $0x24] sm:$0xf]
    %v226 = vld [vmem:[#allocation2 + $0x28] sm:$0xf]
    %v227 = vld [vmem:[#allocation2 + $0x2c] sm:$0xf]
    %v228 = vld [vmem:[#allocation2 + $0x30] sm:$0xf]
    %v229 = vld [vmem:[#allocation2 + $0x34] sm:$0xf]
    %v230 = vld [vmem:[#allocation2 + $0x38] sm:$0xf]
    %v231 = vld [vmem:[#allocation2 + $0x3c] sm:$0xf]
    %v232 = vld [vmem:[%s6] sm:$0x1]
    %v234 = vlaneseq
    %v235 = vshrl.u32 %v234, 7
    %v236 = vsub.s32 0, %v235
    %v237 = vrot.slane %v232, %v236
    %v255 = vunpack.c.l.b16 %v216
    %v256 = vunpack.c.l.b16 %v217
    %v257 = vunpack.c.l.b16 %v218
    %v258 = vunpack.c.l.b16 %v219
    %v259 = vunpack.c.l.b16 %v220
    %v260 = vunpack.c.l.b16 %v221
    %v261 = vunpack.c.l.b16 %v222
    %v262 = vunpack.c.l.b16 %v223
    %v263 = vunpack.c.l.b16 %v224
    %v264 = vunpack.c.l.b16 %v225
    %v265 = vunpack.c.l.b16 %v226
    %v266 = vunpack.c.l.b16 %v227
    %v267 = vunpack.c.l.b16 %v228
    %v268 = vunpack.c.l.b16 %v229
    %v269 = vunpack.c.l.b16 %v230
    %v270 = vunpack.c.l.b16 %v231
    %v271 = vpack.c.b16 %v256, %v255
    %v272 = vpack.c.b16 %v258, %v257
    %v273 = vpack.c.b16 %v260, %v259
    %v274 = vpack.c.b16 %v262, %v261
    %v275 = vpack.c.b16 %v264, %v263
    %v276 = vpack.c.b16 %v266, %v265
    %v277 = vpack.c.b16 %v268, %v267
    %v278 = vpack.c.b16 %v270, %v269
    %287 = vmatprep.subr.bf16.mxu0 0
    %288 = vmatpush1.bf16.msra.mxu0 %v278
    %289 = vmatprep.subr.bf16.mxu0 0
    %290 = vmatpush1.bf16.msra.mxu0 %v277
    %291 = vmatprep.subr.bf16.mxu0 0
    %292 = vmatpush1.bf16.msra.mxu0 %v276
    %293 = vmatprep.subr.bf16.mxu0 0
    %294 = vmatpush1.bf16.msra.mxu0 %v275
    %295 = vmatprep.subr.bf16.mxu0 0
    %296 = vmatpush1.bf16.msra.mxu0 %v274
    %297 = vmatprep.subr.bf16.mxu0 0
    %298 = vmatpush1.bf16.msra.mxu0 %v273
    %299 = vmatprep.subr.bf16.mxu0 0
    %300 = vmatpush1.bf16.msra.mxu0 %v272
    %301 = vmatprep.subr.bf16.mxu0 0
    %302 = vmatpush1.bf16.msra.mxu0 %v271
    %303 = vmatprep.subr.bf16.mxu0 0
    %304 = vmatpush2.bf16.msra.mxu0 0
    %305 = vmatprep.subr.bf16.mxu0 0
    %306 = vmatpush2.bf16.msra.mxu0 0
    %307 = vmatprep.subr.bf16.mxu0 0
    %308 = vmatpush2.bf16.msra.mxu0 0
    %309 = vmatprep.subr.bf16.mxu0 0
    %310 = vmatpush2.bf16.msra.mxu0 0
    %311 = vmatprep.subr.bf16.mxu0 0
    %312 = vmatpush2.bf16.msra.mxu0 0
    %313 = vmatprep.subr.bf16.mxu0 0
    %314 = vmatpush2.bf16.msra.mxu0 0
    %315 = vmatprep.subr.bf16.mxu0 0
    %316 = vmatpush2.bf16.msra.mxu0 0
    %317 = vmatprep.subr.bf16.mxu0 0
    %318 = vmatpush2.bf16.msra.mxu0 0
    %319 = vmatprep.mubr.bf16.mxu0 0
    %320 = vmatmul.mubr.bf16.gmra.mxu0 %v215
    %v321 = vpop.f32.mrf.mxu0
    %v322 = vadd.f32 %v237, %v321
    %v323 = vpop.f32.mrf.mxu0
    %v324 = vpop.f32.mrf.mxu0
    %v325 = vadd.f32 %v237, %v324
    %v326 = vpop.f32.mrf.mxu0
    %327 = vdwg.mxu0
    %v328 = vmax.f32 %v322, 0.0
    %v329 = vmax.f32 %v325, 0.0
    %330 = vadd.xlane.f32.xlu0 %v328
    %v331 = vpop.xlane.xlu0 %330
    %332 = vadd.xlane.f32.xlu0 %v329
    %v333 = vpop.xlane.xlu0 %332
    %v334 = vmul.f32 %v328, %v328
    %v335 = vmul.f32 %v329, %v329
    %336 = vadd.xlane.f32.xlu0 %v334
    %v337 = vpop.xlane.xlu0 %336
    %338 = vadd.xlane.f32.xlu0 %v335
    %v339 = vpop.xlane.xlu0 %338
    %v340 = vmul.f32 %v331, 0.015625
    %v341 = vmul.f32 %v333, 0.015625
    %v342 = vmul.f32 %v337, 0.015625
    %v343 = vmul.f32 %v339, 0.015625
    %v344 = vmul.f32 %v340, %v340
    %v345 = vmul.f32 %v341, %v341
    %v346 = vsub.f32 %v342, %v344
    %v347 = vsub.f32 %v343, %v345
    %v348 = vmax.f32 %v346, 0.0
    %v349 = vmax.f32 %v347, 0.0
    %v350 = vsub.f32 %v328, %v340
    %v351 = vsub.f32 %v329, %v341
    %v352 = vadd.f32 %v348, 1e-05
    %v353 = vadd.f32 %v349, 1e-05
    %v354 = vrsqrt.pop %v352
    %v355 = vrsqrt.pop %v353
    %v356 = vmul.f32 %v350, %v354
    %v357 = vmul.f32 %v351, %v355
    %v358 = vld [vmem:[%s7] sm:$0x1]
    %v360 = vlaneseq
    %v361 = vshrl.u32 %v360, 7
    %v362 = vsub.s32 0, %v361
    %v363 = vrot.slane %v358, %v362
    %v365 = vmul.f32 %v356, %v363
    %v366 = vmul.f32 %v357, %v363
    %v367 = vld [vmem:[%s8] sm:$0x1]
    %v369 = vlaneseq
    %v370 = vshrl.u32 %v369, 7
    %v371 = vsub.s32 0, %v370
    %v372 = vrot.slane %v367, %v371
    %v374 = vadd.f32 %v365, %v372
    %v375 = vadd.f32 %v366, %v372
    %v376 = vpack.c.bf16 %v375, %v374
    %v377 = vld [vmem:[#allocation4] sm:$0xf]
    %v378 = vld [vmem:[#allocation4 + $0x4] sm:$0xf]
    %v379 = vld [vmem:[#allocation4 + $0x8] sm:$0xf]
    %v380 = vld [vmem:[#allocation4 + $0xc] sm:$0xf]
    %v381 = vld [vmem:[#allocation4 + $0x10] sm:$0xf]
    %v382 = vld [vmem:[#allocation4 + $0x14] sm:$0xf]
    %v383 = vld [vmem:[#allocation4 + $0x18] sm:$0xf]
    %v384 = vld [vmem:[#allocation4 + $0x1c] sm:$0xf]
    %v385 = vld [vmem:[#allocation4 + $0x20] sm:$0xf]
    %v386 = vld [vmem:[#allocation4 + $0x24] sm:$0xf]
    %v387 = vld [vmem:[#allocation4 + $0x28] sm:$0xf]
    %v388 = vld [vmem:[#allocation4 + $0x2c] sm:$0xf]
    %v389 = vld [vmem:[#allocation4 + $0x30] sm:$0xf]
    %v390 = vld [vmem:[#allocation4 + $0x34] sm:$0xf]
    %v391 = vld [vmem:[#allocation4 + $0x38] sm:$0xf]
    %v392 = vld [vmem:[#allocation4 + $0x3c] sm:$0xf]
    %v393 = vld [vmem:[%s10] sm:$0x1]
    %v395 = vlaneseq
    %v396 = vshrl.u32 %v395, 7
    %v397 = vsub.s32 0, %v396
    %v398 = vrot.slane %v393, %v397
    %v416 = vunpack.c.l.b16 %v377
    %v417 = vunpack.c.l.b16 %v378
    %v418 = vunpack.c.l.b16 %v379
    %v419 = vunpack.c.l.b16 %v380
    %v420 = vunpack.c.l.b16 %v381
    %v421 = vunpack.c.l.b16 %v382
    %v422 = vunpack.c.l.b16 %v383
    %v423 = vunpack.c.l.b16 %v384
    %v424 = vunpack.c.l.b16 %v385
    %v425 = vunpack.c.l.b16 %v386
    %v426 = vunpack.c.l.b16 %v387
    %v427 = vunpack.c.l.b16 %v388
    %v428 = vunpack.c.l.b16 %v389
    %v429 = vunpack.c.l.b16 %v390
    %v430 = vunpack.c.l.b16 %v391
    %v431 = vunpack.c.l.b16 %v392
    %v432 = vpack.c.b16 %v417, %v416
    %v433 = vpack.c.b16 %v419, %v418
    %v434 = vpack.c.b16 %v421, %v420
    %v435 = vpack.c.b16 %v423, %v422
    %v436 = vpack.c.b16 %v425, %v424
    %v437 = vpack.c.b16 %v427, %v426
    %v438 = vpack.c.b16 %v429, %v428
    %v439 = vpack.c.b16 %v431, %v430
    %448 = vmatprep.subr.bf16.mxu0 0
    %449 = vmatpush1.bf16.msra.mxu0 %v439
    %450 = vmatprep.subr.bf16.mxu0 0
    %451 = vmatpush1.bf16.msra.mxu0 %v438
    %452 = vmatprep.subr.bf16.mxu0 0
    %453 = vmatpush1.bf16.msra.mxu0 %v437
    %454 = vmatprep.subr.bf16.mxu0 0
    %455 = vmatpush1.bf16.msra.mxu0 %v436
    %456 = vmatprep.subr.bf16.mxu0 0
    %457 = vmatpush1.bf16.msra.mxu0 %v435
    %458 = vmatprep.subr.bf16.mxu0 0
    %459 = vmatpush1.bf16.msra.mxu0 %v434
    %460 = vmatprep.subr.bf16.mxu0 0
    %461 = vmatpush1.bf16.msra.mxu0 %v433
    %462 = vmatprep.subr.bf16.mxu0 0
    %463 = vmatpush1.bf16.msra.mxu0 %v432
    %464 = vmatprep.subr.bf16.mxu0 0
    %465 = vmatpush2.bf16.msra.mxu0 0
    %466 = vmatprep.subr.bf16.mxu0 0
    %467 = vmatpush2.bf16.msra.mxu0 0
    %468 = vmatprep.subr.bf16.mxu0 0
    %469 = vmatpush2.bf16.msra.mxu0 0
    %470 = vmatprep.subr.bf16.mxu0 0
    %471 = vmatpush2.bf16.msra.mxu0 0
    %472 = vmatprep.subr.bf16.mxu0 0
    %473 = vmatpush2.bf16.msra.mxu0 0
    %474 = vmatprep.subr.bf16.mxu0 0
    %475 = vmatpush2.bf16.msra.mxu0 0
    %476 = vmatprep.subr.bf16.mxu0 0
    %477 = vmatpush2.bf16.msra.mxu0 0
    %478 = vmatprep.subr.bf16.mxu0 0
    %479 = vmatpush2.bf16.msra.mxu0 0
    %480 = vmatprep.mubr.bf16.mxu0 0
    %481 = vmatmul.mubr.bf16.gmra.mxu0 %v376
    %v482 = vpop.f32.mrf.mxu0
    %v483 = vadd.f32 %v398, %v482
    %v484 = vpop.f32.mrf.mxu0
    %v485 = vpop.f32.mrf.mxu0
    %v486 = vadd.f32 %v398, %v485
    %v487 = vpop.f32.mrf.mxu0
    %488 = vdwg.mxu0
    %v489 = vmax.f32 %v483, 0.0
    %v490 = vmax.f32 %v486, 0.0
    %491 = vadd.xlane.f32.xlu0 %v489
    %v492 = vpop.xlane.xlu0 %491
    %493 = vadd.xlane.f32.xlu0 %v490
    %v494 = vpop.xlane.xlu0 %493
    %v495 = vmul.f32 %v489, %v489
    %v496 = vmul.f32 %v490, %v490
    %497 = vadd.xlane.f32.xlu0 %v495
    %v498 = vpop.xlane.xlu0 %497
    %499 = vadd.xlane.f32.xlu0 %v496
    %v500 = vpop.xlane.xlu0 %499
    %v501 = vmul.f32 %v492, 0.03125
    %v502 = vmul.f32 %v494, 0.03125
    %v503 = vmul.f32 %v498, 0.03125
    %v504 = vmul.f32 %v500, 0.03125
    %v505 = vmul.f32 %v501, %v501
    %v506 = vmul.f32 %v502, %v502
    %v507 = vsub.f32 %v503, %v505
    %v508 = vsub.f32 %v504, %v506
    %v509 = vmax.f32 %v507, 0.0
    %v510 = vmax.f32 %v508, 0.0
    %v511 = vsub.f32 %v489, %v501
    %v512 = vsub.f32 %v490, %v502
    %v513 = vadd.f32 %v509, 1e-05
    %v514 = vadd.f32 %v510, 1e-05
    %v515 = vrsqrt.pop %v513
    %v516 = vrsqrt.pop %v514
    %v517 = vmul.f32 %v511, %v515
    %v518 = vmul.f32 %v512, %v516
    %v519 = vld [vmem:[%s11] sm:$0x1]
    %v521 = vlaneseq
    %v522 = vshrl.u32 %v521, 7
    %v523 = vsub.s32 0, %v522
    %v524 = vrot.slane %v519, %v523
    %v526 = vmul.f32 %v517, %v524
    %v527 = vmul.f32 %v518, %v524
    %v528 = vld [vmem:[%s12] sm:$0x1]
    %v530 = vlaneseq
    %v531 = vshrl.u32 %v530, 7
    %v532 = vsub.s32 0, %v531
    %v533 = vrot.slane %v528, %v532
    %v535 = vadd.f32 %v526, %v533
    %v536 = vadd.f32 %v527, %v533
    %v537 = vpack.c.bf16 %v536, %v535
    %v538 = vld [vmem:[#allocation6] sm:$0xf]
    %v539 = vld [vmem:[#allocation6 + $0x4] sm:$0xf]
    %v540 = vld [vmem:[#allocation6 + $0x8] sm:$0xf]
    %v541 = vld [vmem:[#allocation6 + $0xc] sm:$0xf]
    %v542 = vld [vmem:[#allocation6 + $0x10] sm:$0xf]
    %v543 = vld [vmem:[#allocation6 + $0x14] sm:$0xf]
    %v544 = vld [vmem:[#allocation6 + $0x18] sm:$0xf]
    %v545 = vld [vmem:[#allocation6 + $0x1c] sm:$0xf]
    %v546 = vld [vmem:[#allocation6 + $0x20] sm:$0xf]
    %v547 = vld [vmem:[#allocation6 + $0x24] sm:$0xf]
    %v548 = vld [vmem:[#allocation6 + $0x28] sm:$0xf]
    %v549 = vld [vmem:[#allocation6 + $0x2c] sm:$0xf]
    %v550 = vld [vmem:[#allocation6 + $0x30] sm:$0xf]
    %v551 = vld [vmem:[#allocation6 + $0x34] sm:$0xf]
    %v552 = vld [vmem:[#allocation6 + $0x38] sm:$0xf]
    %v553 = vld [vmem:[#allocation6 + $0x3c] sm:$0xf]
    %v554 = vld [vmem:[%s14] sm:$0x1]
    %v556 = vlaneseq
    %v557 = vshrl.u32 %v556, 7
    %v558 = vsub.s32 0, %v557
    %v559 = vrot.slane %v554, %v558
    %v577 = vunpack.c.l.b16 %v538
    %v578 = vunpack.c.l.b16 %v539
    %v579 = vunpack.c.l.b16 %v540
    %v580 = vunpack.c.l.b16 %v541
    %v581 = vunpack.c.l.b16 %v542
    %v582 = vunpack.c.l.b16 %v543
    %v583 = vunpack.c.l.b16 %v544
    %v584 = vunpack.c.l.b16 %v545
    %v585 = vunpack.c.l.b16 %v546
    %v586 = vunpack.c.l.b16 %v547
    %v587 = vunpack.c.l.b16 %v548
    %v588 = vunpack.c.l.b16 %v549
    %v589 = vunpack.c.l.b16 %v550
    %v590 = vunpack.c.l.b16 %v551
    %v591 = vunpack.c.l.b16 %v552
    %v592 = vunpack.c.l.b16 %v553
    %v593 = vpack.c.b16 %v578, %v577
    %v594 = vpack.c.b16 %v580, %v579
    %v595 = vpack.c.b16 %v582, %v581
    %v596 = vpack.c.b16 %v584, %v583
    %v597 = vpack.c.b16 %v586, %v585
    %v598 = vpack.c.b16 %v588, %v587
    %v599 = vpack.c.b16 %v590, %v589
    %v600 = vpack.c.b16 %v592, %v591
    %609 = vmatprep.subr.bf16.mxu0 0
    %610 = vmatpush1.bf16.msra.mxu0 %v600
    %611 = vmatprep.subr.bf16.mxu0 0
    %612 = vmatpush1.bf16.msra.mxu0 %v599
    %613 = vmatprep.subr.bf16.mxu0 0
    %614 = vmatpush1.bf16.msra.mxu0 %v598
    %615 = vmatprep.subr.bf16.mxu0 0
    %616 = vmatpush1.bf16.msra.mxu0 %v597
    %617 = vmatprep.subr.bf16.mxu0 0
    %618 = vmatpush1.bf16.msra.mxu0 %v596
    %619 = vmatprep.subr.bf16.mxu0 0
    %620 = vmatpush1.bf16.msra.mxu0 %v595
    %621 = vmatprep.subr.bf16.mxu0 0
    %622 = vmatpush1.bf16.msra.mxu0 %v594
    %623 = vmatprep.subr.bf16.mxu0 0
    %624 = vmatpush1.bf16.msra.mxu0 %v593
    %625 = vmatprep.subr.bf16.mxu0 0
    %626 = vmatpush2.bf16.msra.mxu0 0
    %627 = vmatprep.subr.bf16.mxu0 0
    %628 = vmatpush2.bf16.msra.mxu0 0
    %629 = vmatprep.subr.bf16.mxu0 0
    %630 = vmatpush2.bf16.msra.mxu0 0
    %631 = vmatprep.subr.bf16.mxu0 0
    %632 = vmatpush2.bf16.msra.mxu0 0
    %633 = vmatprep.subr.bf16.mxu0 0
    %634 = vmatpush2.bf16.msra.mxu0 0
    %635 = vmatprep.subr.bf16.mxu0 0
    %636 = vmatpush2.bf16.msra.mxu0 0
    %637 = vmatprep.subr.bf16.mxu0 0
    %638 = vmatpush2.bf16.msra.mxu0 0
    %639 = vmatprep.subr.bf16.mxu0 0
    %640 = vmatpush2.bf16.msra.mxu0 0
    %641 = vmatprep.mubr.bf16.mxu0 0
    %642 = vmatmul.mubr.bf16.gmra.mxu0 %v537
    %v643 = vpop.f32.mrf.mxu0
    %v644 = vadd.f32 %v559, %v643
    %v645 = vpop.f32.mrf.mxu0
    %v646 = vpop.f32.mrf.mxu0
    %v647 = vadd.f32 %v559, %v646
    %v648 = vpop.f32.mrf.mxu0
    %649 = vdwg.mxu0
    %v650 = vpack.c.bf16 %v647, %v644
    %v652 = vunpack.c.l.b16 %v650
    %v653 = vunpack.c.h.b16 %v650
    %v654 = vpack.c.b16 %v652, %v652
    %v655 = vpack.c.b16 %v653, %v653
    %658 = vst [vmem:[%s15] sm:$0xf] %v654
    %659 = vst [vmem:[%s15 + $0x4] sm:$0xf] %v655
    // Predicated region
    $region74: #{policy_forward.1} parent=1 // pred_check
      _
    $region75: #{policy_forward.1} parent=1 // pred_check_branch
      %661 = sbr.rel (0) target = $region77
    $region76: #{policy_forward.1} parent=1 // pred_region
      _
    $region77: #{policy_forward.1} parent=1 // pred_fallthru
      _
    // Predicated region
    $region78: #{policy_forward.1} parent=1 // pred_check
      _
    $region79: #{policy_forward.1} parent=1 // pred_check_branch
      %663 = sbr.rel (0) target = $region81
    $region80: #{policy_forward.1} parent=1 // pred_region
      _
    $region81: #{policy_forward.1} parent=1 // pred_fallthru
      _
    %664 = vsyncpa [#allocation3], 1
    %665 = vsyncpa [#allocation5], 1

</llo_original>
